<compile_context>
chip_gen: v6e
topology: v6e:2x2x1
jax: 0.10.0
libtpu: 0.0.40
codegen_flags: <defaults>
</compile_context>

<pallas_src>
import math
from functools import partial

import jax
import jax.numpy as jnp
from jax.experimental import pallas as pl
from jax.experimental.pallas import tpu as pltpu


def _round_up(x, m):
    return (x + m - 1) // m * m


def _num_tensorcores():
    # v7x has 2 TensorCores per chip (shard the batch across them); v5e/v6e
    # have 1 (a single grid step avoids ~0.35 us/step + DMA-setup overhead).
    kind = jax.devices()[0].device_kind.lower()
    return 2 if ("v7" in kind or "7x" in kind) else 1


def _hmlstm_kernel(db, hdim, x_ref, st_ref, w_ref, b_ref, zaux_ref, out_ref):
    """One batch tile of the HMLSTM cell.

    x_ref   : [TB, K]     un-gated [h_bottom | h | h_top]   (MXU dtype)
    st_ref  : [TB, PACK]  f32 state slab [h | c | z | z_bottom | pad]
    w_ref   : [K, 4H]     fused gate weights, columns [i | o | f | g]
    b_ref   : [1, 4H]     fused gate bias (f32)
    zaux_ref: [1, ZP]     f32 [ w4 | 0_H | u4 | r4 | b4 | pad ]
    out_ref : [TB, PACK]  packed [h_new | c_new | z_new | (unwritten pad)]
    """
    k = x_ref.shape[-1]
    st = st_ref[...]
    h = st[:, :hdim]
    c = st[:, hdim:2 * hdim]
    z = st[:, 2 * hdim:2 * hdim + 1]
    zb = st[:, 2 * hdim + 1:2 * hdim + 2]
    x = x_ref[...]

    # Per-column gating mask (entries are exact 0/1): cols [0,db) -> z_bottom,
    # [db, db+H) -> 1 (recurrent h is never gated), [db+H, K) -> z.
    col = jax.lax.broadcasted_iota(jnp.int32, (1, k), 1)
    mask = jnp.where(col < db, zb, jnp.where(col < db + hdim, 1.0, z))
    xg = x * mask.astype(x.dtype)

    # Single fused MXU pass: [TB,K] @ [K,4H] (one 128-lane output tile at H=32).
    s = jnp.dot(xg, w_ref[...], preferred_element_type=jnp.float32) + b_ref[...]

    # Full-width activation pass (EUP has slack; avoids sub-tile relayouts):
    # sigmoid over lanes [0,3H) = [i|o|f], tanh over [3H,4H) = g.
    lane = jax.lax.broadcasted_iota(jnp.int32, s.shape, 1)
    act = jnp.where(lane < 3 * hdim, jax.nn.sigmoid(s), jnp.tanh(s))
    i_g = act[:, 0 * hdim:1 * hdim]
    o_g = act[:, 1 * hdim:2 * hdim]
    f_g = act[:, 2 * hdim:3 * hdim]
    g_g = act[:, 3 * hdim:4 * hdim]

    # flush (z==1) / update (z==0 & zb==1) / copy (else), as torch.eq does.
    flush = z == 1.0
    updat = (z == 0.0) & (zb == 1.0)
    ig = i_g * g_g
    c_new = jnp.where(flush, ig, jnp.where(updat, c * f_g + ig, c))
    h_new = jnp.where(flush | updat, jnp.tanh(c_new) * o_g, h)

    # Boundary gate: s4 = hb@w4 + h_new@r4 + ht@u4 + b4 (uses the *updated* h,
    # mirroring the in-place h mutation in the PyTorch forward).  Two small
    # lane reductions instead of a 129th matmul column.
    zaux = zaux_ref[...]
    wz = zaux[:, :k]                        # [1, K] = [w4 | 0_H | u4]
    r4 = zaux[:, k:k + hdim]                # [1, H]
    b4 = zaux[:, k + hdim:k + hdim + 1]     # [1, 1]
    s4 = (jnp.sum(xg.astype(jnp.float32) * wz, axis=-1, keepdims=True)
          + jnp.sum(h_new * r4, axis=-1, keepdims=True) + b4)
    sz = jax.nn.sigmoid(s4)
    # TODO(synk): HardSigm/Round class bodies were not provided; standard
    # HMLSTM defs are used: HardSigm(a=1)(x)=clip((x+1)/2,0,1),
    # Round(th=0.5)(x)=(x>th).  Composed on sigmoid (as the PyTorch module is
    # written) this makes z_out == 1 except when sigmoid underflows to 0.
    z_new = (jnp.clip((sz + 1.0) * 0.5, 0.0, 1.0) > 0.5).astype(jnp.float32)

    # Direct lane-slice stores into the packed output block; pad lanes past
    # 2H+1 are left unwritten (the wrapper slices them off).
    out_ref[:, :hdim] = h_new.astype(out_ref.dtype)
    out_ref[:, hdim:2 * hdim] = c_new.astype(out_ref.dtype)
    out_ref[:, 2 * hdim:2 * hdim + 1] = z_new.astype(out_ref.dtype)


def hmlstm_cell1_forward(h_bottom, z_bottom, h_top, z, h, c, fused_params,
                         *, tb=None, max_tb=1024):
    """Run the fused HMLSTM cell once.  Returns (h_new, c_new, z_new).

    `fused_params` comes from pack_params(); call that ONCE outside any time
    loop (it also performs the one-off MXU-dtype weight cast).
    """
    B, Db = h_bottom.shape
    _, Dt = h_top.shape
    _, H = h.shape
    w_big, b_row, zaux = fused_params
    K, NC = w_big.shape
    assert K == Db + H + Dt and NC == 4 * H
    PACK = _round_up(2 * H + 2, 128)          # [h | c | z | zb] slab lane width
    mxu_dtype = w_big.dtype
    out_dtype = jnp.promote_types(h.dtype, c.dtype)   # never down-cast c

    # Generation-aware batch tiling: one full tile per TensorCore.
    if tb is None:
        tb = pl.cdiv(B, _num_tensorcores())
    tb = max(8, min(_round_up(tb, 8), _round_up(B, 8), max_tb))
    Bp = _round_up(B, tb)
    grid = (Bp // tb,)

    # Lane-dense input slabs: one MXU-operand slab + one f32 state slab.
    # TODO(synk): for a full sequence, fuse the time loop into one pallas_call
    # (grid over T, state kept in VMEM scratch) and feed the packed output
    # slab straight back as next-step state instead of re-packing per call.
    x_cat = jnp.concatenate([h_bottom, h, h_top], axis=-1).astype(mxu_dtype)
    state = jnp.concatenate([h, c, z, z_bottom], axis=-1).astype(jnp.float32)
    x_cat = jnp.pad(x_cat, ((0, Bp - B), (0, 0)))
    state = jnp.pad(state, ((0, Bp - B), (0, PACK - state.shape[1])))

    x_item = jnp.dtype(mxu_dtype).itemsize
    out_item = jnp.dtype(out_dtype).itemsize
    const_bytes = K * NC * x_item + NC * 4 + zaux.size * 4
    stream_bytes = tb * (K * x_item + PACK * 4 + PACK * out_item)
    # double-buffered streams + constants + generous epilogue-temporary slack,
    # clamped to [16, 32] MiB so it is safe on every generation (v7x incl.).
    vmem_est = 2 * stream_bytes + 2 * const_bytes + 16 * tb * max(NC, PACK) * 4
    vmem_limit = int(min(32 << 20, max(16 << 20, 2 * vmem_est)))

    cost = pl.CostEstimate(
        flops=int(2 * Bp * K * NC + 12 * Bp * NC),
        transcendentals=int(Bp * (2 * NC + H + 1)),
        bytes_accessed=int(Bp * (K * x_item + PACK * 4 + PACK * out_item)
                           + const_bytes),
    )

    row = lambda d: pl.BlockSpec((tb, d), lambda i: (i, 0))
    cst = lambda shape: pl.BlockSpec(shape, lambda i: (0, 0))

    out = pl.pallas_call(
        partial(_hmlstm_kernel, Db, H),
        out_shape=jax.ShapeDtypeStruct((Bp, PACK), out_dtype),
        grid=grid,
        in_specs=[row(K), row(PACK), cst((K, NC)), cst((1, NC)),
                  cst((1, zaux.shape[1]))],
        out_specs=row(PACK),
        compiler_params=pltpu.CompilerParams(
            dimension_semantics=("parallel",),
            vmem_limit_bytes=vmem_limit),
        cost_estimate=cost,
    )(x_cat, state, w_big, b_row, zaux)

    h_out = out[:B, :H].astype(h.dtype)
    c_out = out[:B, H:2 * H].astype(c.dtype)
    z_out = out[:B, 2 * H:2 * H + 1].astype(z.dtype)
    return h_out, c_out, z_out


def init_params(key, input_bottom_size, hidden_size, input_top_size,
                dtype=jnp.float32):
    """U(-1/sqrt(H), 1/sqrt(H)) init mirroring reset_parameters().

    Gates 0..3 = [i, g, o, f] of width H; gate 4 = width-1 boundary gate.
    """
    sd = 1.0 / math.sqrt(hidden_size)
    sizes = [hidden_size] * 4 + [1]
    ks = jax.random.split(key, 20)
    u = lambda k, shp: jax.random.uniform(k, shp, dtype, -sd, sd)
    W = [u(ks[g], (input_bottom_size, sizes[g])) for g in range(5)]
    R = [u(ks[5 + g], (hidden_size, sizes[g])) for g in range(5)]
    U = [u(ks[10 + g], (input_top_size, sizes[g])) for g in range(5)]
    b = [u(ks[15 + g], (sizes[g],)) for g in range(5)]
    return dict(W=W, R=R, U=U, b=b)


def pack_params(params, mxu_dtype=jnp.bfloat16):
    """Fuse per-gate weights once (incl. the MXU-dtype cast); do this OUTSIDE
    any time loop.

    Returns (w_big [K,4H] mxu_dtype, b_row [1,4H] f32, zaux [1,ZP] f32) where
    zaux = [ w4 | 0_H | u4 | r4 | b4 | 0-pad ] and ZP = round_up(K+H+1, 128).
    Gate column order is [i | o | f | g] (sigmoid lanes first, tanh last).
    """
    W, R, U, b = params["W"], params["R"], params["U"], params["b"]
    order = (0, 2, 3, 1)                      # torch gate indices for i, o, f, g
    H = R[0].shape[0]
    Db, Dt = W[0].shape[0], U[0].shape[0]
    K = Db + H + Dt
    wg = jnp.concatenate([W[g] for g in order], axis=1)
    rg = jnp.concatenate([R[g] for g in order], axis=1)
    ug = jnp.concatenate([U[g] for g in order], axis=1)
    w_big = jnp.concatenate([wg, rg, ug], axis=0).astype(mxu_dtype)    # [K,4H]
    b_row = jnp.concatenate([b[g] for g in order])[None, :].astype(jnp.float32)
    wz = jnp.concatenate([W[4][:, 0], jnp.zeros((H,), W[4].dtype), U[4][:, 0]])
    zcore = jnp.concatenate([wz, R[4][:, 0], b[4]])                    # [K+H+1]
    ZP = _round_up(K + H + 1, 128)
    zaux = jnp.pad(zcore, (0, ZP - zcore.shape[0]))[None, :].astype(jnp.float32)
    return w_big, b_row, zaux


def reference_forward(h_bottom, z_bottom, h_top, z, h, c, params):
    """Pure-JAX f32 reference matching the PyTorch forward exactly."""
    W, R, U, b = params["W"], params["R"], params["U"], params["b"]
    hb = h_bottom * z_bottom
    ht = h_top * z
    s = [hb @ W[g] + h @ R[g] + ht @ U[g] + b[g] for g in range(4)]
    i = jax.nn.sigmoid(s[0])
    g = jnp.tanh(s[1])
    o = jax.nn.sigmoid(s[2])
    f = jax.nn.sigmoid(s[3])
    flush = z == 1.0
    updat = (z == 0.0) & (z_bottom == 1.0)
    c_new = jnp.where(flush, i * g, jnp.where(updat, c * f + i * g, c))
    h_new = jnp.where(flush | updat, jnp.tanh(c_new) * o, h)
    s4 = hb @ W[4] + h_new @ R[4] + ht @ U[4] + b[4]   # uses the updated h
    sz = jax.nn.sigmoid(s4)
    z_new = (jnp.clip((sz + 1.0) * 0.5, 0.0, 1.0) > 0.5).astype(z.dtype)
    return h_new, c_new, z_new


if __name__ == "__main__":
    B = 64
    INPUT_BOTTOM = 16
    HIDDEN = 32
    INPUT_TOP = 24

    key = jax.random.PRNGKey(0)
    kp, kb, kt, kh, kc, kz, kzb = jax.random.split(key, 7)

    params = init_params(kp, INPUT_BOTTOM, HIDDEN, INPUT_TOP)

    h_bottom = jax.random.normal(kb, (B, INPUT_BOTTOM), jnp.float32)
    h_top = jax.random.normal(kt, (B, INPUT_TOP), jnp.float32)
    h = jax.random.normal(kh, (B, HIDDEN), jnp.float32)
    c = jax.random.normal(kc, (B, HIDDEN), jnp.float32)
    z = jax.random.bernoulli(kz, 0.5, (B, 1)).astype(jnp.float32)
    z_bottom = jax.random.bernoulli(kzb, 0.5, (B, 1)).astype(jnp.float32)

    h_ref, c_ref, z_ref = reference_forward(
        h_bottom, z_bottom, h_top, z, h, c, params)

    # f32 MXU operands: tight check of the fused-kernel semantics.
    fused32 = pack_params(params, mxu_dtype=jnp.float32)
    h32, c32, z32 = jax.block_until_ready(
        hmlstm_cell1_forward(h_bottom, z_bottom, h_top, z, h, c, fused32))
    assert jnp.allclose(h32, h_ref, atol=1e-4, rtol=1e-4)
    assert jnp.allclose(c32, c_ref, atol=1e-4, rtol=1e-4)
    assert jnp.allclose(z32, z_ref)

    # Default bf16 MXU operands (fast path on v5e/v6e/v7x): looser tolerance.
    fusedbf = pack_params(params)
    hbf, cbf, zbf = jax.block_until_ready(
        hmlstm_cell1_forward(h_bottom, z_bottom, h_top, z, h, c, fusedbf))
    assert jnp.allclose(hbf, h_ref, atol=3e-2, rtol=3e-2)
    assert jnp.allclose(cbf, c_ref, atol=3e-2, rtol=3e-2)
    assert jnp.allclose(zbf, z_ref)

    print("KERNEL_OK")
</pallas_src>

<mosaic_0001>
module attributes {stable_mosaic.version = 11 : i64} {
  func.func @_hmlstm_kernel(%arg0: i32, %arg1: memref<64x72xf32, #tpu.memory_space<vmem>>, %arg2: memref<64x128xf32, #tpu.memory_space<vmem>>, %arg3: memref<72x128xf32, #tpu.memory_space<vmem>>, %arg4: memref<1x128xf32, #tpu.memory_space<vmem>>, %arg5: memref<1x128xf32, #tpu.memory_space<vmem>>, %arg6: memref<64x128xf32, #tpu.memory_space<vmem>>) attributes {dimension_semantics = [#tpu.dimension_semantics<parallel>], iteration_bounds = array<i64: 1>, scalar_prefetch = 0 : i64, scratch_operands = 0 : i64, tpu.core_type = #tpu.core_type<tc>, window_params = [{transform_indices = @transform_0, window_bounds = array<i64: 64, 72>}, {transform_indices = @transform_1, window_bounds = array<i64: 64, 128>}, {pipeline_mode = #tpu.pipeline_mode<synchronous>, transform_indices = @transform_2, window_bounds = array<i64: 72, 128>}, {pipeline_mode = #tpu.pipeline_mode<synchronous>, transform_indices = @transform_3, window_bounds = array<i64: 1, 128>}, {pipeline_mode = #tpu.pipeline_mode<synchronous>, transform_indices = @transform_4, window_bounds = array<i64: 1, 128>}, {transform_indices = @transform_5, window_bounds = array<i64: 64, 128>}]} {
    %c0 = arith.constant 0 : index
    %c0_0 = arith.constant 0 : index
    %0 = vector.load %arg2[%c0, %c0_0] : memref<64x128xf32, #tpu.memory_space<vmem>>, vector<64x128xf32>
    %1 = vector.extract_strided_slice %0 {offsets = [0, 0], sizes = [64, 32], strides = [1, 1]} : vector<64x128xf32> to vector<64x32xf32>
    %2 = vector.extract_strided_slice %0 {offsets = [0, 32], sizes = [64, 32], strides = [1, 1]} : vector<64x128xf32> to vector<64x32xf32>
    %3 = vector.extract_strided_slice %0 {offsets = [0, 64], sizes = [64, 1], strides = [1, 1]} : vector<64x128xf32> to vector<64x1xf32>
    %4 = vector.extract_strided_slice %0 {offsets = [0, 65], sizes = [64, 1], strides = [1, 1]} : vector<64x128xf32> to vector<64x1xf32>
    %c0_1 = arith.constant 0 : index
    %c0_2 = arith.constant 0 : index
    %5 = vector.load %arg1[%c0_1, %c0_2] : memref<64x72xf32, #tpu.memory_space<vmem>>, vector<64x72xf32>
    %6 = tpu.iota {dimensions = array<i32: 1>} : vector<1x72xi32>
    %c16_i32 = arith.constant 16 : i32
    %7 = vector.broadcast %c16_i32 : i32 to vector<1x72xi32>
    %8 = arith.cmpi slt, %6, %7 : vector<1x72xi32>
    %c48_i32 = arith.constant 48 : i32
    %9 = vector.broadcast %c48_i32 : i32 to vector<1x72xi32>
    %10 = arith.cmpi slt, %6, %9 : vector<1x72xi32>
    %cst = arith.constant 1.000000e+00 : f32
    %11 = vector.shape_cast %10 : vector<1x72xi1> to vector<1x72xi1>
    %12 = vector.broadcast %11 : vector<1x72xi1> to vector<64x72xi1>
    %13 = vector.broadcast %cst : f32 to vector<64x72xf32>
    %14 = vector.shape_cast %3 : vector<64x1xf32> to vector<64x1xf32>
    %15 = vector.broadcast %14 : vector<64x1xf32> to vector<64x72xf32>
    %16 = arith.select %12, %13, %15 : vector<64x72xi1>, vector<64x72xf32>
    %17 = vector.shape_cast %8 : vector<1x72xi1> to vector<1x72xi1>
    %18 = vector.broadcast %17 : vector<1x72xi1> to vector<64x72xi1>
    %19 = vector.shape_cast %4 : vector<64x1xf32> to vector<64x1xf32>
    %20 = vector.broadcast %19 : vector<64x1xf32> to vector<64x72xf32>
    %21 = arith.select %18, %20, %16 : vector<64x72xi1>, vector<64x72xf32>
    %22 = arith.mulf %5, %21 : vector<64x72xf32>
    %c0_3 = arith.constant 0 : index
    %c0_4 = arith.constant 0 : index
    %23 = vector.load %arg3[%c0_3, %c0_4] : memref<72x128xf32, #tpu.memory_space<vmem>>, vector<72x128xf32>
    %cst_5 = arith.constant dense<0.000000e+00> : vector<64x128xf32>
    %24 = tpu.matmul %22, %23, %cst_5 {dimension_numbers = #tpu.dot_dimension_numbers<[1], [0], [0], [1], [0, 0, 1, 1], [], []>} : vector<64x72xf32>, vector<72x128xf32>, vector<64x128xf32> -> vector<64x128xf32>
    %c0_6 = arith.constant 0 : index
    %c0_7 = arith.constant 0 : index
    %25 = vector.load %arg4[%c0_6, %c0_7] : memref<1x128xf32, #tpu.memory_space<vmem>>, vector<1x128xf32>
    %26 = vector.broadcast %25 : vector<1x128xf32> to vector<64x128xf32>
    %27 = arith.addf %24, %26 : vector<64x128xf32>
    %28 = tpu.iota {dimensions = array<i32: 1>} : vector<64x128xi32>
    %c96_i32 = arith.constant 96 : i32
    %29 = vector.broadcast %c96_i32 : i32 to vector<64x128xi32>
    %30 = arith.cmpi slt, %28, %29 : vector<64x128xi32>
    %31 = arith.negf %27 : vector<64x128xf32>
    %32 = math.exp %31 : vector<64x128xf32>
    %cst_8 = arith.constant 1.000000e+00 : f32
    %33 = vector.broadcast %cst_8 : f32 to vector<64x128xf32>
    %34 = arith.addf %33, %32 : vector<64x128xf32>
    %35 = arith.divf %33, %34 : vector<64x128xf32>
    %36 = math.tanh %27 : vector<64x128xf32>
    %37 = arith.select %30, %35, %36 : vector<64x128xi1>, vector<64x128xf32>
    %38 = vector.extract_strided_slice %37 {offsets = [0, 0], sizes = [64, 32], strides = [1, 1]} : vector<64x128xf32> to vector<64x32xf32>
    %39 = vector.extract_strided_slice %37 {offsets = [0, 32], sizes = [64, 32], strides = [1, 1]} : vector<64x128xf32> to vector<64x32xf32>
    %40 = vector.extract_strided_slice %37 {offsets = [0, 64], sizes = [64, 32], strides = [1, 1]} : vector<64x128xf32> to vector<64x32xf32>
    %41 = vector.extract_strided_slice %37 {offsets = [0, 96], sizes = [64, 32], strides = [1, 1]} : vector<64x128xf32> to vector<64x32xf32>
    %cst_9 = arith.constant 1.000000e+00 : f32
    %42 = vector.broadcast %cst_9 : f32 to vector<64x1xf32>
    %43 = arith.cmpf oeq, %3, %42 : vector<64x1xf32>
    %cst_10 = arith.constant 0.000000e+00 : f32
    %44 = vector.broadcast %cst_10 : f32 to vector<64x1xf32>
    %45 = arith.cmpf oeq, %3, %44 : vector<64x1xf32>
    %cst_11 = arith.constant 1.000000e+00 : f32
    %46 = vector.broadcast %cst_11 : f32 to vector<64x1xf32>
    %47 = arith.cmpf oeq, %4, %46 : vector<64x1xf32>
    %48 = arith.andi %45, %47 : vector<64x1xi1>
    %49 = arith.mulf %38, %41 : vector<64x32xf32>
    %50 = arith.mulf %2, %40 : vector<64x32xf32>
    %51 = arith.addf %50, %49 : vector<64x32xf32>
    %52 = vector.shape_cast %48 : vector<64x1xi1> to vector<64x1xi1>
    %53 = vector.broadcast %52 : vector<64x1xi1> to vector<64x32xi1>
    %54 = arith.select %53, %51, %2 : vector<64x32xi1>, vector<64x32xf32>
    %55 = vector.shape_cast %43 : vector<64x1xi1> to vector<64x1xi1>
    %56 = vector.broadcast %55 : vector<64x1xi1> to vector<64x32xi1>
    %57 = arith.select %56, %49, %54 : vector<64x32xi1>, vector<64x32xf32>
    %58 = arith.ori %43, %48 : vector<64x1xi1>
    %59 = math.tanh %57 : vector<64x32xf32>
    %60 = arith.mulf %59, %39 : vector<64x32xf32>
    %61 = vector.shape_cast %58 : vector<64x1xi1> to vector<64x1xi1>
    %62 = vector.broadcast %61 : vector<64x1xi1> to vector<64x32xi1>
    %63 = arith.select %62, %60, %1 : vector<64x32xi1>, vector<64x32xf32>
    %c0_12 = arith.constant 0 : index
    %c0_13 = arith.constant 0 : index
    %64 = vector.load %arg5[%c0_12, %c0_13] : memref<1x128xf32, #tpu.memory_space<vmem>>, vector<1x128xf32>
    %65 = vector.extract_strided_slice %64 {offsets = [0, 0], sizes = [1, 72], strides = [1, 1]} : vector<1x128xf32> to vector<1x72xf32>
    %66 = vector.extract_strided_slice %64 {offsets = [0, 72], sizes = [1, 32], strides = [1, 1]} : vector<1x128xf32> to vector<1x32xf32>
    %67 = vector.extract_strided_slice %64 {offsets = [0, 104], sizes = [1, 1], strides = [1, 1]} : vector<1x128xf32> to vector<1x1xf32>
    %68 = vector.broadcast %65 : vector<1x72xf32> to vector<64x72xf32>
    %69 = arith.mulf %22, %68 : vector<64x72xf32>
    %cst_14 = arith.constant dense<0.000000e+00> : vector<64xf32>
    %70 = vector.multi_reduction <add>, %69, %cst_14 [1] : vector<64x72xf32> to vector<64xf32>
    %71 = vector.shape_cast %70 : vector<64xf32> to vector<64x1xf32>
    %72 = vector.broadcast %66 : vector<1x32xf32> to vector<64x32xf32>
    %73 = arith.mulf %63, %72 : vector<64x32xf32>
    %cst_15 = arith.constant dense<0.000000e+00> : vector<64xf32>
    %74 = vector.multi_reduction <add>, %73, %cst_15 [1] : vector<64x32xf32> to vector<64xf32>
    %75 = vector.shape_cast %74 : vector<64xf32> to vector<64x1xf32>
    %76 = arith.addf %71, %75 : vector<64x1xf32>
    %77 = vector.broadcast %67 : vector<1x1xf32> to vector<64x1xf32>
    %78 = arith.addf %76, %77 : vector<64x1xf32>
    %79 = arith.negf %78 : vector<64x1xf32>
    %80 = math.exp %79 : vector<64x1xf32>
    %cst_16 = arith.constant 1.000000e+00 : f32
    %81 = vector.broadcast %cst_16 : f32 to vector<64x1xf32>
    %82 = arith.addf %81, %80 : vector<64x1xf32>
    %83 = arith.divf %81, %82 : vector<64x1xf32>
    %cst_17 = arith.constant 1.000000e+00 : f32
    %84 = vector.broadcast %cst_17 : f32 to vector<64x1xf32>
    %85 = arith.addf %83, %84 : vector<64x1xf32>
    %cst_18 = arith.constant 5.000000e-01 : f32
    %86 = vector.broadcast %cst_18 : f32 to vector<64x1xf32>
    %87 = arith.mulf %85, %86 : vector<64x1xf32>
    %cst_19 = arith.constant 0.000000e+00 : f32
    %cst_20 = arith.constant 1.000000e+00 : f32
    %88 = vector.broadcast %cst_19 : f32 to vector<64x1xf32>
    %89 = arith.maximumf %88, %87 : vector<64x1xf32>
    %90 = vector.broadcast %cst_20 : f32 to vector<64x1xf32>
    %91 = arith.minimumf %90, %89 : vector<64x1xf32>
    %cst_21 = arith.constant 5.000000e-01 : f32
    %92 = vector.broadcast %cst_21 : f32 to vector<64x1xf32>
    %93 = arith.cmpf ogt, %91, %92 : vector<64x1xf32>
    %94 = arith.extui %93 : vector<64x1xi1> to vector<64x1xi32>
    %95 = arith.sitofp %94 : vector<64x1xi32> to vector<64x1xf32>
    %c0_22 = arith.constant 0 : index
    %c0_23 = arith.constant 0 : index
    %96 = vector.load %arg6[%c0_22, %c0_23] : memref<64x128xf32, #tpu.memory_space<vmem>>, vector<64x32xf32>
    tpu.vector_store %arg6[%c0_22, %c0_23], %63 {strides = array<i32>} : memref<64x128xf32, #tpu.memory_space<vmem>>, vector<64x32xf32>,
    %c0_24 = arith.constant 0 : index
    %c32 = arith.constant 32 : index
    %97 = vector.load %arg6[%c0_24, %c32] : memref<64x128xf32, #tpu.memory_space<vmem>>, vector<64x32xf32>
    tpu.vector_store %arg6[%c0_24, %c32], %57 {strides = array<i32>} : memref<64x128xf32, #tpu.memory_space<vmem>>, vector<64x32xf32>,
    %c0_25 = arith.constant 0 : index
    %c64 = arith.constant 64 : index
    %98 = vector.load %arg6[%c0_25, %c64] : memref<64x128xf32, #tpu.memory_space<vmem>>, vector<64x1xf32>
    tpu.vector_store %arg6[%c0_25, %c64], %95 {strides = array<i32>} : memref<64x128xf32, #tpu.memory_space<vmem>>, vector<64x1xf32>,
    return
  }
  func.func @transform_0(%arg0: i32) -> (i32, i32) {
    %c0_i32 = arith.constant 0 : i32
    %c0_i32_0 = arith.constant 0 : i32
    return %arg0, %c0_i32 : i32, i32
  }
  func.func @transform_1(%arg0: i32) -> (i32, i32) {
    %c0_i32 = arith.constant 0 : i32
    %c0_i32_0 = arith.constant 0 : i32
    return %arg0, %c0_i32 : i32, i32
  }
  func.func @transform_2(%arg0: i32) -> (i32, i32) {
    %c0_i32 = arith.constant 0 : i32
    %c0_i32_0 = arith.constant 0 : i32
    %c0_i32_1 = arith.constant 0 : i32
    return %c0_i32, %c0_i32_0 : i32, i32
  }
  func.func @transform_3(%arg0: i32) -> (i32, i32) {
    %c0_i32 = arith.constant 0 : i32
    %c0_i32_0 = arith.constant 0 : i32
    %c0_i32_1 = arith.constant 0 : i32
    return %c0_i32, %c0_i32_0 : i32, i32
  }
  func.func @transform_4(%arg0: i32) -> (i32, i32) {
    %c0_i32 = arith.constant 0 : i32
    %c0_i32_0 = arith.constant 0 : i32
    %c0_i32_1 = arith.constant 0 : i32
    return %c0_i32, %c0_i32_0 : i32, i32
  }
  func.func @transform_5(%arg0: i32) -> (i32, i32) {
    %c0_i32 = arith.constant 0 : i32
    %c0_i32_0 = arith.constant 0 : i32
    return %arg0, %c0_i32 : i32, i32
  }
}

</mosaic_0001>

<llo_original>
// kernel: tpu_custom_call.1
$region0: #{tpu_custom_call.1}
  #allocation0 [shape = 'u32[]', space=smem, size = 0x4, offset = 0x4, fixed_abs, tag = 'smem constant byte address 0x4 - core index']
  #allocation1 [shape = 'u32[144,128]{1,0:T(1,128)}', space=vmem, size = 0x12000, scoped, tag = 'internal scratch']
  %s0 = inlined_call_operand.hbm [shape: f32[64,72], index: 0, kind: input, shape index: {}]
  %s1 = inlined_call_operand.hbm [shape: f32[64,128], index: 1, kind: input, shape index: {}]
  %s2 = inlined_call_operand.hbm [shape: f32[72,128], index: 2, kind: input, shape index: {}]
  %s3 = inlined_call_operand.vmem [shape: f32[1,128], index: 3, kind: input, shape index: {}]
  %s4 = inlined_call_operand.vmem [shape: f32[1,128], index: 4, kind: input, shape index: {}]
  %s5 = inlined_call_operand.hbm [shape: f32[64,128], index: 5, kind: output, shape index: {}]
  %s6 = sld [smem:[#allocation0]]
  $region42: #{tpu_custom_call.1} parent=0
    _
  %s8 = ssub.s32 1, %s6
  %s9 = scalar_select 0, %s8, %s6
  $region1: #{tpu_custom_call.1} parent=0
    #allocation2 [shape = 'u8[32768]{0}', space=vmem, size = 0x8000, scoped, tag = 'input window, operand 0, single buffered']
    #allocation3 [shape = 's32[1]{0}', space=sflag, size = 0x4, scoped, tag = 'scoped memory for tpu_custom_call.1']
    #allocation4 [shape = 's32[1]{0}', space=sflag, size = 0x4, scoped, tag = 'scoped memory for tpu_custom_call.1']
    #allocation5 [shape = 'u8[32768]{0}', space=vmem, size = 0x8000, scoped, tag = 'input window, operand 1, single buffered']
    #allocation6 [shape = 's32[1]{0}', space=sflag, size = 0x4, scoped, tag = 'scoped memory for tpu_custom_call.1']
    #allocation7 [shape = 'u8[36864]{0}', space=vmem, size = 0x9000, scoped, tag = 'input window, operand 2, single buffered']
    #allocation8 [shape = 'u8[32768]{0}', space=vmem, size = 0x8000, scoped, tag = 'output window, operand 0, single buffered']
    %10 = vsyncpa [#allocation3], 0
    %11 = vsyncpa [#allocation6], 0
    %12 = vsyncpa [#allocation4], 0
    // Predicated region
    $region2: #{tpu_custom_call.1} parent=1 // pred_check
      _
    $region3: #{tpu_custom_call.1} parent=1 // pred_check_branch
      %14 = sbr.rel (0) target = $region5
    $region4: #{tpu_custom_call.1} parent=1 // pred_region
      %s16 = ssub.s32 1024, 1024
      %17 = vsyncadd [#allocation3], %s16
      %s18 = sshll.u32 [#allocation2], 4
      %s19 = int_to_ptr.vmem [resolvable:$true] %s18
      %24 = dma.hbm_to_vmem [thread:$0]  %s0, 1024, %s19, [#allocation3], 128, 128, 8
    $region5: #{tpu_custom_call.1} parent=1 // pred_fallthru
      _
    // Predicated region
    $region6: #{tpu_custom_call.1} parent=1 // pred_check
      _
    $region7: #{tpu_custom_call.1} parent=1 // pred_check_branch
      %26 = sbr.rel (0) target = $region9
    $region8: #{tpu_custom_call.1} parent=1 // pred_region
      %s28 = ssub.s32 1024, 1024
      %29 = vsyncadd [#allocation6], %s28
      %s30 = sshll.u32 [#allocation5], 4
      %s31 = int_to_ptr.vmem [resolvable:$true] %s30
      %36 = dma.hbm_to_vmem [thread:$0]  %s1, 1024, %s31, [#allocation6], 128, 128, 8
    $region9: #{tpu_custom_call.1} parent=1 // pred_fallthru
      _
    // Predicated region
    $region10: #{tpu_custom_call.1} parent=1 // pred_check
      _
    $region11: #{tpu_custom_call.1} parent=1 // pred_check_branch
      %38 = sbr.rel (0) target = $region13
    $region12: #{tpu_custom_call.1} parent=1 // pred_region
      %s40 = ssub.s32 1152, 1152
      %41 = vsyncadd [#allocation6], %s40
      %s42 = sshll.u32 [#allocation7], 4
      %s43 = int_to_ptr.vmem [resolvable:$true] %s42
      %48 = dma.hbm_to_vmem [thread:$0]  %s2, 1152, %s43, [#allocation6], 128, 128, 8
    $region13: #{tpu_custom_call.1} parent=1 // pred_fallthru
      _
    // Predicated region
    $region14: #{tpu_custom_call.1} parent=1 // pred_check
      _
    $region15: #{tpu_custom_call.1} parent=1 // pred_check_branch
      %50 = sbr.rel (0) target = $region17
    $region16: #{tpu_custom_call.1} parent=1 // pred_region
      _
    $region17: #{tpu_custom_call.1} parent=1 // pred_fallthru
      _
    // Predicated region
    $region18: #{tpu_custom_call.1} parent=1 // pred_check
      _
    $region19: #{tpu_custom_call.1} parent=1 // pred_check_branch
      %52 = sbr.rel (0) target = $region21
    $region20: #{tpu_custom_call.1} parent=1 // pred_region
      _
    $region21: #{tpu_custom_call.1} parent=1 // pred_fallthru
      _
    // Predicated region
    $region22: #{tpu_custom_call.1} parent=1 // pred_check
      _
    $region23: #{tpu_custom_call.1} parent=1 // pred_check_branch
      %54 = sbr.rel (0) target = $region25
    $region24: #{tpu_custom_call.1} parent=1 // pred_region
      %55 = dma.done [#allocation3], 1024
    $region25: #{tpu_custom_call.1} parent=1 // pred_fallthru
      _
    // Predicated region
    $region26: #{tpu_custom_call.1} parent=1 // pred_check
      _
    $region27: #{tpu_custom_call.1} parent=1 // pred_check_branch
      %57 = sbr.rel (0) target = $region29
    $region28: #{tpu_custom_call.1} parent=1 // pred_region
      %58 = dma.done [#allocation6], 1024
    $region29: #{tpu_custom_call.1} parent=1 // pred_fallthru
      _
    // Predicated region
    $region30: #{tpu_custom_call.1} parent=1 // pred_check
      _
    $region31: #{tpu_custom_call.1} parent=1 // pred_check_branch
      %60 = sbr.rel (0) target = $region33
    $region32: #{tpu_custom_call.1} parent=1 // pred_region
      %61 = dma.done [#allocation6], 1152
    $region33: #{tpu_custom_call.1} parent=1 // pred_fallthru
      _
    %v62 = vld [vmem:[#allocation5] sm:$0xff]
    %v63 = vld [vmem:[#allocation5 + $0x8] sm:$0xff]
    %v64 = vld [vmem:[#allocation5 + $0x10] sm:$0xff]
    %v65 = vld [vmem:[#allocation5 + $0x18] sm:$0xff]
    %v66 = vld [vmem:[#allocation5 + $0x20] sm:$0xff]
    %v67 = vld [vmem:[#allocation5 + $0x28] sm:$0xff]
    %v68 = vld [vmem:[#allocation5 + $0x30] sm:$0xff]
    %v69 = vld [vmem:[#allocation5 + $0x38] sm:$0xff]
    %v70 = vld [vmem:[#allocation2] sm:$0xff]
    %v71 = vld [vmem:[#allocation2 + $0x8] sm:$0xff]
    %v72 = vld [vmem:[#allocation2 + $0x10] sm:$0xff]
    %v73 = vld [vmem:[#allocation2 + $0x18] sm:$0xff]
    %v74 = vld [vmem:[#allocation2 + $0x20] sm:$0xff]
    %v75 = vld [vmem:[#allocation2 + $0x28] sm:$0xff]
    %v76 = vld [vmem:[#allocation2 + $0x30] sm:$0xff]
    %v77 = vld [vmem:[#allocation2 + $0x38] sm:$0xff]
    %v78 = vlaneseq
    %v79 = vand.u32 %v78, 127
    %vm80 = vcmp.lt.s32.totalorder %v79, 16
    %vm81 = vcmp.lt.s32.totalorder %v79, 48
    %v82 = vsel %vm81, 1, 0
    %vm83 = vcmp.eq.s32.totalorder %v82, 1
    %85 = vset.pattern.permute.xlu0 64
    %86 = vperm.xlu0 %85, %v62
    %v87 = vpop.permute.xlu0 %86
    %90 = vset.pattern.permute.xlu0 64
    %91 = vperm.xlu0 %90, %v63
    %v92 = vpop.permute.xlu0 %91
    %95 = vset.pattern.permute.xlu0 64
    %96 = vperm.xlu0 %95, %v64
    %v97 = vpop.permute.xlu0 %96
    %100 = vset.pattern.permute.xlu0 64
    %101 = vperm.xlu0 %100, %v65
    %v102 = vpop.permute.xlu0 %101
    %105 = vset.pattern.permute.xlu0 64
    %106 = vperm.xlu0 %105, %v66
    %v107 = vpop.permute.xlu0 %106
    %110 = vset.pattern.permute.xlu0 64
    %111 = vperm.xlu0 %110, %v67
    %v112 = vpop.permute.xlu0 %111
    %115 = vset.pattern.permute.xlu0 64
    %116 = vperm.xlu0 %115, %v68
    %v117 = vpop.permute.xlu0 %116
    %120 = vset.pattern.permute.xlu0 64
    %121 = vperm.xlu0 %120, %v69
    %v122 = vpop.permute.xlu0 %121
    %v124 = vsel %vm83, 1.0, %v87
    %v125 = vsel %vm83, 1.0, %v92
    %v126 = vsel %vm83, 1.0, %v97
    %v127 = vsel %vm83, 1.0, %v102
    %v128 = vsel %vm83, 1.0, %v107
    %v129 = vsel %vm83, 1.0, %v112
    %v130 = vsel %vm83, 1.0, %v117
    %v131 = vsel %vm83, 1.0, %v122
    %v132 = vsel %vm80, 1, 0
    %vm133 = vcmp.eq.s32.totalorder %v132, 1
    %134 = vset.pattern.permute.xlu0 65
    %135 = vperm.xlu0 %134, %v62
    %v136 = vpop.permute.xlu0 %135
    %138 = vset.pattern.permute.xlu0 65
    %139 = vperm.xlu0 %138, %v63
    %v140 = vpop.permute.xlu0 %139
    %142 = vset.pattern.permute.xlu0 65
    %143 = vperm.xlu0 %142, %v64
    %v144 = vpop.permute.xlu0 %143
    %146 = vset.pattern.permute.xlu0 65
    %147 = vperm.xlu0 %146, %v65
    %v148 = vpop.permute.xlu0 %147
    %150 = vset.pattern.permute.xlu0 65
    %151 = vperm.xlu0 %150, %v66
    %v152 = vpop.permute.xlu0 %151
    %154 = vset.pattern.permute.xlu0 65
    %155 = vperm.xlu0 %154, %v67
    %v156 = vpop.permute.xlu0 %155
    %158 = vset.pattern.permute.xlu0 65
    %159 = vperm.xlu0 %158, %v68
    %v160 = vpop.permute.xlu0 %159
    %162 = vset.pattern.permute.xlu0 65
    %163 = vperm.xlu0 %162, %v69
    %v164 = vpop.permute.xlu0 %163
    %v166 = vsel %vm133, %v136, %v124
    %v167 = vsel %vm133, %v140, %v125
    %v168 = vsel %vm133, %v144, %v126
    %v169 = vsel %vm133, %v148, %v127
    %v170 = vsel %vm133, %v152, %v128
    %v171 = vsel %vm133, %v156, %v129
    %v172 = vsel %vm133, %v160, %v130
    %v173 = vsel %vm133, %v164, %v131
    %v174 = vmul.f32 %v70, %v166
    %v175 = vmul.f32 %v71, %v167
    %v176 = vmul.f32 %v72, %v168
    %v177 = vmul.f32 %v73, %v169
    %v178 = vmul.f32 %v74, %v170
    %v179 = vmul.f32 %v75, %v171
    %v180 = vmul.f32 %v76, %v172
    %v181 = vmul.f32 %v77, %v173
    %v182 = vld [vmem:[#allocation7] sm:$0xff]
    %v183 = vld [vmem:[#allocation7 + $0x8] sm:$0xff]
    %v184 = vld [vmem:[#allocation7 + $0x10] sm:$0xff]
    %v185 = vld [vmem:[#allocation7 + $0x18] sm:$0xff]
    %v186 = vld [vmem:[#allocation7 + $0x20] sm:$0xff]
    %v187 = vld [vmem:[#allocation7 + $0x28] sm:$0xff]
    %v188 = vld [vmem:[#allocation7 + $0x30] sm:$0xff]
    %v189 = vld [vmem:[#allocation7 + $0x38] sm:$0xff]
    %v190 = vld [vmem:[#allocation7 + $0x40] sm:$0xff]
    %v191 = vld [vmem:[%s3] sm:$0x1]
    %v193 = vlaneseq
    %v194 = vshrl.u32 %v193, 7
    %v195 = vsub.s32 0, %v194
    %v196 = vrot.slane %v191, %v195
    %vm198 = vcmask 588800
    %v200 = vsel %vm198, %v174, 0
    %v203 = vsel %vm198, %v175, 0
    %v206 = vsel %vm198, %v176, 0
    %v209 = vsel %vm198, %v177, 0
    %v212 = vsel %vm198, %v178, 0
    %v215 = vsel %vm198, %v179, 0
    %v218 = vsel %vm198, %v180, 0
    %v221 = vsel %vm198, %v181, 0
    %223 = vmatprep.subr.mxu0 0.0
    %224 = vmatpush1.msra.mxu0 0.0
    %225 = vmatprep.subr.mxu0 0.0
    %226 = vmatpush1.msra.mxu0 0.0
    %227 = vmatprep.subr.mxu0 0.0
    %228 = vmatpush1.msra.mxu0 0.0
    %229 = vmatprep.subr.mxu0 0.0
    %230 = vmatpush1.msra.mxu0 0.0
    %231 = vmatprep.subr.mxu0 0.0
    %232 = vmatpush1.msra.mxu0 0.0
    %233 = vmatprep.subr.mxu0 0.0
    %234 = vmatpush1.msra.mxu0 0.0
    %235 = vmatprep.subr.mxu0 0.0
    %236 = vmatpush1.msra.mxu0 0.0
    %237 = vmatprep.subr.mxu0 0.0
    %238 = vmatpush1.msra.mxu0 %v190
    %239 = vmatprep.subr.mxu0 0.0
    %240 = vmatpush1.msra.mxu0 %v189
    %241 = vmatprep.subr.mxu0 0.0
    %242 = vmatpush1.msra.mxu0 %v188
    %243 = vmatprep.subr.mxu0 0.0
    %244 = vmatpush1.msra.mxu0 %v187
    %245 = vmatprep.subr.mxu0 0.0
    %246 = vmatpush1.msra.mxu0 %v186
    %247 = vmatprep.subr.mxu0 0.0
    %248 = vmatpush1.msra.mxu0 %v185
    %249 = vmatprep.subr.mxu0 0.0
    %250 = vmatpush1.msra.mxu0 %v184
    %251 = vmatprep.subr.mxu0 0.0
    %252 = vmatpush1.msra.mxu0 %v183
    %253 = vmatprep.subr.mxu0 0.0
    %254 = vmatpush1.msra.mxu0 %v182
    %255 = vmatprep.subr.mxu0 0.0
    %256 = vmatpush2.msra.mxu0 0.0
    %257 = vmatprep.subr.mxu0 0.0
    %258 = vmatpush2.msra.mxu0 0.0
    %259 = vmatprep.subr.mxu0 0.0
    %260 = vmatpush2.msra.mxu0 0.0
    %261 = vmatprep.subr.mxu0 0.0
    %262 = vmatpush2.msra.mxu0 0.0
    %263 = vmatprep.subr.mxu0 0.0
    %264 = vmatpush2.msra.mxu0 0.0
    %265 = vmatprep.subr.mxu0 0.0
    %266 = vmatpush2.msra.mxu0 0.0
    %267 = vmatprep.subr.mxu0 0.0
    %268 = vmatpush2.msra.mxu0 0.0
    %269 = vmatprep.subr.mxu0 0.0
    %270 = vmatpush2.msra.mxu0 0.0
    %271 = vmatprep.subr.mxu0 0.0
    %272 = vmatpush2.msra.mxu0 0.0
    %273 = vmatprep.subr.mxu0 0.0
    %274 = vmatpush2.msra.mxu0 0.0
    %275 = vmatprep.subr.mxu0 0.0
    %276 = vmatpush2.msra.mxu0 0.0
    %277 = vmatprep.subr.mxu0 0.0
    %278 = vmatpush2.msra.mxu0 0.0
    %279 = vmatprep.subr.mxu0 0.0
    %280 = vmatpush2.msra.mxu0 0.0
    %281 = vmatprep.subr.mxu0 0.0
    %282 = vmatpush2.msra.mxu0 0.0
    %283 = vmatprep.subr.mxu0 0.0
    %284 = vmatpush2.msra.mxu0 0.0
    %285 = vmatprep.subr.mxu0 0.0
    %286 = vmatpush2.msra.mxu0 0.0
    %287 = vmatprep.mubr.f32.mxu0 0.0
    %288 = vmatmul.mubr.f32.gmra.mxu0 %v200
    %v289 = vpop.f32.mrf.mxu0
    %v290 = vadd.f32 %v196, %v289
    %v291 = vpop.f32.mrf.mxu0
    %292 = vmatprep.mubr.f32.mxu0 0.0
    %293 = vmatmul.mubr.f32.gmra.mxu0 %v203
    %v294 = vpop.f32.mrf.mxu0
    %v295 = vadd.f32 %v196, %v294
    %v296 = vpop.f32.mrf.mxu0
    %297 = vmatprep.mubr.f32.mxu0 0.0
    %298 = vmatmul.mubr.f32.gmra.mxu0 %v206
    %v299 = vpop.f32.mrf.mxu0
    %v300 = vadd.f32 %v196, %v299
    %v301 = vpop.f32.mrf.mxu0
    %302 = vmatprep.mubr.f32.mxu0 0.0
    %303 = vmatmul.mubr.f32.gmra.mxu0 %v209
    %v304 = vpop.f32.mrf.mxu0
    %v305 = vadd.f32 %v196, %v304
    %v306 = vpop.f32.mrf.mxu0
    %307 = vmatprep.mubr.f32.mxu0 0.0
    %308 = vmatmul.mubr.f32.gmra.mxu0 %v212
    %v309 = vpop.f32.mrf.mxu0
    %v310 = vadd.f32 %v196, %v309
    %v311 = vpop.f32.mrf.mxu0
    %312 = vmatprep.mubr.f32.mxu0 0.0
    %313 = vmatmul.mubr.f32.gmra.mxu0 %v215
    %v314 = vpop.f32.mrf.mxu0
    %v315 = vadd.f32 %v196, %v314
    %v316 = vpop.f32.mrf.mxu0
    %317 = vmatprep.mubr.f32.mxu0 0.0
    %318 = vmatmul.mubr.f32.gmra.mxu0 %v218
    %v319 = vpop.f32.mrf.mxu0
    %v320 = vadd.f32 %v196, %v319
    %v321 = vpop.f32.mrf.mxu0
    %322 = vmatprep.mubr.f32.mxu0 0.0
    %323 = vmatmul.mubr.f32.gmra.mxu0 %v221
    %v324 = vpop.f32.mrf.mxu0
    %v325 = vadd.f32 %v196, %v324
    %v326 = vpop.f32.mrf.mxu0
    %327 = vdwg.mxu0
    %vm328 = vcmp.lt.s32.totalorder %v79, 96
    %v329 = vxor.u32 %v290, 2147483648
    %v330 = vxor.u32 %v295, 2147483648
    %v331 = vxor.u32 %v300, 2147483648
    %v332 = vxor.u32 %v305, 2147483648
    %v333 = vxor.u32 %v310, 2147483648
    %v334 = vxor.u32 %v315, 2147483648
    %v335 = vxor.u32 %v320, 2147483648
    %v336 = vxor.u32 %v325, 2147483648
    %v337 = vmul.f32 %v329, 1.442695
    %v338 = vpow.pop %v337
    %v339 = vmul.f32 %v330, 1.442695
    %v340 = vpow.pop %v339
    %v341 = vmul.f32 %v331, 1.442695
    %v342 = vpow.pop %v341
    %v343 = vmul.f32 %v332, 1.442695
    %v344 = vpow.pop %v343
    %v345 = vmul.f32 %v333, 1.442695
    %v346 = vpow.pop %v345
    %v347 = vmul.f32 %v334, 1.442695
    %v348 = vpow.pop %v347
    %v349 = vmul.f32 %v335, 1.442695
    %v350 = vpow.pop %v349
    %v351 = vmul.f32 %v336, 1.442695
    %v352 = vpow.pop %v351
    %v353 = vadd.f32 %v338, 1.0
    %v354 = vadd.f32 %v340, 1.0
    %v355 = vadd.f32 %v342, 1.0
    %v356 = vadd.f32 %v344, 1.0
    %v357 = vadd.f32 %v346, 1.0
    %v358 = vadd.f32 %v348, 1.0
    %v359 = vadd.f32 %v350, 1.0
    %v360 = vadd.f32 %v352, 1.0
    %v361 = vrcp.pop %v353
    %v362 = vmul.f32 1.0, %v361
    %v363 = vrcp.pop %v354
    %v364 = vmul.f32 1.0, %v363
    %v365 = vrcp.pop %v355
    %v366 = vmul.f32 1.0, %v365
    %v367 = vrcp.pop %v356
    %v368 = vmul.f32 1.0, %v367
    %v369 = vrcp.pop %v357
    %v370 = vmul.f32 1.0, %v369
    %v371 = vrcp.pop %v358
    %v372 = vmul.f32 1.0, %v371
    %v373 = vrcp.pop %v359
    %v374 = vmul.f32 1.0, %v373
    %v375 = vrcp.pop %v360
    %v376 = vmul.f32 1.0, %v375
    %v377 = vtanh.pop %v290
    %v378 = vtanh.pop %v295
    %v379 = vtanh.pop %v300
    %v380 = vtanh.pop %v305
    %v381 = vtanh.pop %v310
    %v382 = vtanh.pop %v315
    %v383 = vtanh.pop %v320
    %v384 = vtanh.pop %v325
    %v385 = vsel %vm328, %v362, %v377
    %v386 = vsel %vm328, %v364, %v378
    %v387 = vsel %vm328, %v366, %v379
    %v388 = vsel %vm328, %v368, %v380
    %v389 = vsel %vm328, %v370, %v381
    %v390 = vsel %vm328, %v372, %v382
    %v391 = vsel %vm328, %v374, %v383
    %v392 = vsel %vm328, %v376, %v384
    %vm393 = vcmp.eq.f32.partialorder %v62, 1.0
    %vm394 = vcmp.eq.f32.partialorder %v63, 1.0
    %vm395 = vcmp.eq.f32.partialorder %v64, 1.0
    %vm396 = vcmp.eq.f32.partialorder %v65, 1.0
    %vm397 = vcmp.eq.f32.partialorder %v66, 1.0
    %vm398 = vcmp.eq.f32.partialorder %v67, 1.0
    %vm399 = vcmp.eq.f32.partialorder %v68, 1.0
    %vm400 = vcmp.eq.f32.partialorder %v69, 1.0
    %vm401 = vcmp.eq.f32.partialorder %v62, 0.0
    %vm402 = vcmp.eq.f32.partialorder %v63, 0.0
    %vm403 = vcmp.eq.f32.partialorder %v64, 0.0
    %vm404 = vcmp.eq.f32.partialorder %v65, 0.0
    %vm405 = vcmp.eq.f32.partialorder %v66, 0.0
    %vm406 = vcmp.eq.f32.partialorder %v67, 0.0
    %vm407 = vcmp.eq.f32.partialorder %v68, 0.0
    %vm408 = vcmp.eq.f32.partialorder %v69, 0.0
    %v409 = vsel %vm393, 1, 0
    %v410 = vsel %vm394, 1, 0
    %v411 = vsel %vm395, 1, 0
    %v412 = vsel %vm396, 1, 0
    %v413 = vsel %vm397, 1, 0
    %v414 = vsel %vm398, 1, 0
    %v415 = vsel %vm399, 1, 0
    %v416 = vsel %vm400, 1, 0
    %417 = vrot.lane.b32.xlu0 %v409, 127
    %v418 = vpop.permute.xlu0 %417
    %419 = vrot.lane.b32.xlu0 %v410, 127
    %v420 = vpop.permute.xlu0 %419
    %421 = vrot.lane.b32.xlu0 %v411, 127
    %v422 = vpop.permute.xlu0 %421
    %423 = vrot.lane.b32.xlu0 %v412, 127
    %v424 = vpop.permute.xlu0 %423
    %425 = vrot.lane.b32.xlu0 %v413, 127
    %v426 = vpop.permute.xlu0 %425
    %427 = vrot.lane.b32.xlu0 %v414, 127
    %v428 = vpop.permute.xlu0 %427
    %429 = vrot.lane.b32.xlu0 %v415, 127
    %v430 = vpop.permute.xlu0 %429
    %431 = vrot.lane.b32.xlu0 %v416, 127
    %v432 = vpop.permute.xlu0 %431
    %vm433 = vcmp.ne.s32.totalorder %v418, 0
    %vm434 = vcmp.ne.s32.totalorder %v420, 0
    %vm435 = vcmp.ne.s32.totalorder %v422, 0
    %vm436 = vcmp.ne.s32.totalorder %v424, 0
    %vm437 = vcmp.ne.s32.totalorder %v426, 0
    %vm438 = vcmp.ne.s32.totalorder %v428, 0
    %vm439 = vcmp.ne.s32.totalorder %v430, 0
    %vm440 = vcmp.ne.s32.totalorder %v432, 0
    %vm441 = vmand %vm401, %vm433
    %vm442 = vmand %vm402, %vm434
    %vm443 = vmand %vm403, %vm435
    %vm444 = vmand %vm404, %vm436
    %vm445 = vmand %vm405, %vm437
    %vm446 = vmand %vm406, %vm438
    %vm447 = vmand %vm407, %vm439
    %vm448 = vmand %vm408, %vm440
    %457 = vrot.lane.b32.xlu0 %v385, 32
    %v458 = vpop.permute.xlu0 %457
    %459 = vrot.lane.b32.xlu0 %v386, 32
    %v460 = vpop.permute.xlu0 %459
    %461 = vrot.lane.b32.xlu0 %v387, 32
    %v462 = vpop.permute.xlu0 %461
    %463 = vrot.lane.b32.xlu0 %v388, 32
    %v464 = vpop.permute.xlu0 %463
    %465 = vrot.lane.b32.xlu0 %v389, 32
    %v466 = vpop.permute.xlu0 %465
    %467 = vrot.lane.b32.xlu0 %v390, 32
    %v468 = vpop.permute.xlu0 %467
    %469 = vrot.lane.b32.xlu0 %v391, 32
    %v470 = vpop.permute.xlu0 %469
    %471 = vrot.lane.b32.xlu0 %v392, 32
    %v472 = vpop.permute.xlu0 %471
    %v481 = vmul.f32 %v385, %v458
    %v482 = vmul.f32 %v386, %v460
    %v483 = vmul.f32 %v387, %v462
    %v484 = vmul.f32 %v388, %v464
    %v485 = vmul.f32 %v389, %v466
    %v486 = vmul.f32 %v390, %v468
    %v487 = vmul.f32 %v391, %v470
    %v488 = vmul.f32 %v392, %v472
    %489 = vrot.lane.b32.xlu0 %v385, 96
    %v490 = vpop.permute.xlu0 %489
    %491 = vrot.lane.b32.xlu0 %v386, 96
    %v492 = vpop.permute.xlu0 %491
    %493 = vrot.lane.b32.xlu0 %v387, 96
    %v494 = vpop.permute.xlu0 %493
    %495 = vrot.lane.b32.xlu0 %v388, 96
    %v496 = vpop.permute.xlu0 %495
    %497 = vrot.lane.b32.xlu0 %v389, 96
    %v498 = vpop.permute.xlu0 %497
    %499 = vrot.lane.b32.xlu0 %v390, 96
    %v500 = vpop.permute.xlu0 %499
    %501 = vrot.lane.b32.xlu0 %v391, 96
    %v502 = vpop.permute.xlu0 %501
    %503 = vrot.lane.b32.xlu0 %v392, 96
    %v504 = vpop.permute.xlu0 %503
    %v513 = vmul.f32 %v62, %v490
    %v514 = vmul.f32 %v63, %v492
    %v515 = vmul.f32 %v64, %v494
    %v516 = vmul.f32 %v65, %v496
    %v517 = vmul.f32 %v66, %v498
    %v518 = vmul.f32 %v67, %v500
    %v519 = vmul.f32 %v68, %v502
    %v520 = vmul.f32 %v69, %v504
    %529 = vrot.lane.b32.xlu0 %v481, 32
    %v530 = vpop.permute.xlu0 %529
    %531 = vrot.lane.b32.xlu0 %v482, 32
    %v532 = vpop.permute.xlu0 %531
    %533 = vrot.lane.b32.xlu0 %v483, 32
    %v534 = vpop.permute.xlu0 %533
    %535 = vrot.lane.b32.xlu0 %v484, 32
    %v536 = vpop.permute.xlu0 %535
    %537 = vrot.lane.b32.xlu0 %v485, 32
    %v538 = vpop.permute.xlu0 %537
    %539 = vrot.lane.b32.xlu0 %v486, 32
    %v540 = vpop.permute.xlu0 %539
    %541 = vrot.lane.b32.xlu0 %v487, 32
    %v542 = vpop.permute.xlu0 %541
    %543 = vrot.lane.b32.xlu0 %v488, 32
    %v544 = vpop.permute.xlu0 %543
    %v553 = vadd.f32 %v513, %v530
    %v554 = vadd.f32 %v514, %v532
    %v555 = vadd.f32 %v515, %v534
    %v556 = vadd.f32 %v516, %v536
    %v557 = vadd.f32 %v517, %v538
    %v558 = vadd.f32 %v518, %v540
    %v559 = vadd.f32 %v519, %v542
    %v560 = vadd.f32 %v520, %v544
    %v561 = vsel %vm441, 1, 0
    %v562 = vsel %vm442, 1, 0
    %v563 = vsel %vm443, 1, 0
    %v564 = vsel %vm444, 1, 0
    %v565 = vsel %vm445, 1, 0
    %v566 = vsel %vm446, 1, 0
    %v567 = vsel %vm447, 1, 0
    %v568 = vsel %vm448, 1, 0
    %569 = vset.pattern.permute.xlu0 64
    %570 = vperm.xlu0 %569, %v561
    %v571 = vpop.permute.xlu0 %570
    %572 = vset.pattern.permute.xlu0 64
    %573 = vperm.xlu0 %572, %v562
    %v574 = vpop.permute.xlu0 %573
    %575 = vset.pattern.permute.xlu0 64
    %576 = vperm.xlu0 %575, %v563
    %v577 = vpop.permute.xlu0 %576
    %578 = vset.pattern.permute.xlu0 64
    %579 = vperm.xlu0 %578, %v564
    %v580 = vpop.permute.xlu0 %579
    %581 = vset.pattern.permute.xlu0 64
    %582 = vperm.xlu0 %581, %v565
    %v583 = vpop.permute.xlu0 %582
    %584 = vset.pattern.permute.xlu0 64
    %585 = vperm.xlu0 %584, %v566
    %v586 = vpop.permute.xlu0 %585
    %587 = vset.pattern.permute.xlu0 64
    %588 = vperm.xlu0 %587, %v567
    %v589 = vpop.permute.xlu0 %588
    %590 = vset.pattern.permute.xlu0 64
    %591 = vperm.xlu0 %590, %v568
    %v592 = vpop.permute.xlu0 %591
    %vm593 = vcmp.eq.s32.totalorder %v571, 1
    %vm594 = vcmp.eq.s32.totalorder %v574, 1
    %vm595 = vcmp.eq.s32.totalorder %v577, 1
    %vm596 = vcmp.eq.s32.totalorder %v580, 1
    %vm597 = vcmp.eq.s32.totalorder %v583, 1
    %vm598 = vcmp.eq.s32.totalorder %v586, 1
    %vm599 = vcmp.eq.s32.totalorder %v589, 1
    %vm600 = vcmp.eq.s32.totalorder %v592, 1
    %v601 = vsel %vm593, %v553, %v62
    %v602 = vsel %vm594, %v554, %v63
    %v603 = vsel %vm595, %v555, %v64
    %v604 = vsel %vm596, %v556, %v65
    %v605 = vsel %vm597, %v557, %v66
    %v606 = vsel %vm598, %v558, %v67
    %v607 = vsel %vm599, %v559, %v68
    %v608 = vsel %vm600, %v560, %v69
    %609 = vset.pattern.permute.xlu0 64
    %610 = vperm.xlu0 %609, %v409
    %v611 = vpop.permute.xlu0 %610
    %612 = vset.pattern.permute.xlu0 64
    %613 = vperm.xlu0 %612, %v410
    %v614 = vpop.permute.xlu0 %613
    %615 = vset.pattern.permute.xlu0 64
    %616 = vperm.xlu0 %615, %v411
    %v617 = vpop.permute.xlu0 %616
    %618 = vset.pattern.permute.xlu0 64
    %619 = vperm.xlu0 %618, %v412
    %v620 = vpop.permute.xlu0 %619
    %621 = vset.pattern.permute.xlu0 64
    %622 = vperm.xlu0 %621, %v413
    %v623 = vpop.permute.xlu0 %622
    %624 = vset.pattern.permute.xlu0 64
    %625 = vperm.xlu0 %624, %v414
    %v626 = vpop.permute.xlu0 %625
    %627 = vset.pattern.permute.xlu0 64
    %628 = vperm.xlu0 %627, %v415
    %v629 = vpop.permute.xlu0 %628
    %630 = vset.pattern.permute.xlu0 64
    %631 = vperm.xlu0 %630, %v416
    %v632 = vpop.permute.xlu0 %631
    %vm633 = vcmp.eq.s32.totalorder %v611, 1
    %vm634 = vcmp.eq.s32.totalorder %v614, 1
    %vm635 = vcmp.eq.s32.totalorder %v617, 1
    %vm636 = vcmp.eq.s32.totalorder %v620, 1
    %vm637 = vcmp.eq.s32.totalorder %v623, 1
    %vm638 = vcmp.eq.s32.totalorder %v626, 1
    %vm639 = vcmp.eq.s32.totalorder %v629, 1
    %vm640 = vcmp.eq.s32.totalorder %v632, 1
    %649 = vrot.lane.b32.xlu0 %v601, 96
    %v650 = vpop.permute.xlu0 %649
    %651 = vrot.lane.b32.xlu0 %v602, 96
    %v652 = vpop.permute.xlu0 %651
    %653 = vrot.lane.b32.xlu0 %v603, 96
    %v654 = vpop.permute.xlu0 %653
    %655 = vrot.lane.b32.xlu0 %v604, 96
    %v656 = vpop.permute.xlu0 %655
    %657 = vrot.lane.b32.xlu0 %v605, 96
    %v658 = vpop.permute.xlu0 %657
    %659 = vrot.lane.b32.xlu0 %v606, 96
    %v660 = vpop.permute.xlu0 %659
    %661 = vrot.lane.b32.xlu0 %v607, 96
    %v662 = vpop.permute.xlu0 %661
    %663 = vrot.lane.b32.xlu0 %v608, 96
    %v664 = vpop.permute.xlu0 %663
    %v673 = vsel %vm633, %v481, %v650
    %v674 = vsel %vm634, %v482, %v652
    %v675 = vsel %vm635, %v483, %v654
    %v676 = vsel %vm636, %v484, %v656
    %v677 = vsel %vm637, %v485, %v658
    %v678 = vsel %vm638, %v486, %v660
    %v679 = vsel %vm639, %v487, %v662
    %v680 = vsel %vm640, %v488, %v664
    %vm681 = vmor %vm393, %vm441
    %vm682 = vmor %vm394, %vm442
    %vm683 = vmor %vm395, %vm443
    %vm684 = vmor %vm396, %vm444
    %vm685 = vmor %vm397, %vm445
    %vm686 = vmor %vm398, %vm446
    %vm687 = vmor %vm399, %vm447
    %vm688 = vmor %vm400, %vm448
    %v689 = vtanh.pop %v673
    %v690 = vtanh.pop %v674
    %v691 = vtanh.pop %v675
    %v692 = vtanh.pop %v676
    %v693 = vtanh.pop %v677
    %v694 = vtanh.pop %v678
    %v695 = vtanh.pop %v679
    %v696 = vtanh.pop %v680
    %v697 = vmul.f32 %v689, %v490
    %v698 = vmul.f32 %v690, %v492
    %v699 = vmul.f32 %v691, %v494
    %v700 = vmul.f32 %v692, %v496
    %v701 = vmul.f32 %v693, %v498
    %v702 = vmul.f32 %v694, %v500
    %v703 = vmul.f32 %v695, %v502
    %v704 = vmul.f32 %v696, %v504
    %v705 = vsel %vm681, 1, 0
    %v706 = vsel %vm682, 1, 0
    %v707 = vsel %vm683, 1, 0
    %v708 = vsel %vm684, 1, 0
    %v709 = vsel %vm685, 1, 0
    %v710 = vsel %vm686, 1, 0
    %v711 = vsel %vm687, 1, 0
    %v712 = vsel %vm688, 1, 0
    %713 = vset.pattern.permute.xlu0 64
    %714 = vperm.xlu0 %713, %v705
    %v715 = vpop.permute.xlu0 %714
    %716 = vset.pattern.permute.xlu0 64
    %717 = vperm.xlu0 %716, %v706
    %v718 = vpop.permute.xlu0 %717
    %719 = vset.pattern.permute.xlu0 64
    %720 = vperm.xlu0 %719, %v707
    %v721 = vpop.permute.xlu0 %720
    %722 = vset.pattern.permute.xlu0 64
    %723 = vperm.xlu0 %722, %v708
    %v724 = vpop.permute.xlu0 %723
    %725 = vset.pattern.permute.xlu0 64
    %726 = vperm.xlu0 %725, %v709
    %v727 = vpop.permute.xlu0 %726
    %728 = vset.pattern.permute.xlu0 64
    %729 = vperm.xlu0 %728, %v710
    %v730 = vpop.permute.xlu0 %729
    %731 = vset.pattern.permute.xlu0 64
    %732 = vperm.xlu0 %731, %v711
    %v733 = vpop.permute.xlu0 %732
    %734 = vset.pattern.permute.xlu0 64
    %735 = vperm.xlu0 %734, %v712
    %v736 = vpop.permute.xlu0 %735
    %vm737 = vcmp.eq.s32.totalorder %v715, 1
    %vm738 = vcmp.eq.s32.totalorder %v718, 1
    %vm739 = vcmp.eq.s32.totalorder %v721, 1
    %vm740 = vcmp.eq.s32.totalorder %v724, 1
    %vm741 = vcmp.eq.s32.totalorder %v727, 1
    %vm742 = vcmp.eq.s32.totalorder %v730, 1
    %vm743 = vcmp.eq.s32.totalorder %v733, 1
    %vm744 = vcmp.eq.s32.totalorder %v736, 1
    %v745 = vsel %vm737, %v697, %v62
    %v746 = vsel %vm738, %v698, %v63
    %v747 = vsel %vm739, %v699, %v64
    %v748 = vsel %vm740, %v700, %v65
    %v749 = vsel %vm741, %v701, %v66
    %v750 = vsel %vm742, %v702, %v67
    %v751 = vsel %vm743, %v703, %v68
    %v752 = vsel %vm744, %v704, %v69
    %v753 = vld [vmem:[%s4] sm:$0x1]
    %v755 = vlaneseq
    %v756 = vshrl.u32 %v755, 7
    %v757 = vsub.s32 0, %v756
    %v758 = vrot.slane %v753, %v757
    %v760 = vmul.f32 %v174, %v758
    %v761 = vmul.f32 %v175, %v758
    %v762 = vmul.f32 %v176, %v758
    %v763 = vmul.f32 %v177, %v758
    %v764 = vmul.f32 %v178, %v758
    %v765 = vmul.f32 %v179, %v758
    %v766 = vmul.f32 %v180, %v758
    %v767 = vmul.f32 %v181, %v758
    %v768 = vsel %vm198, %v760, 0.0
    %769 = vadd.xlane.f32.xlu0 %v768
    %v770 = vpop.xlane.xlu0 %769
    %v771 = vsel %vm198, %v761, 0.0
    %772 = vadd.xlane.f32.xlu0 %v771
    %v773 = vpop.xlane.xlu0 %772
    %v774 = vsel %vm198, %v762, 0.0
    %775 = vadd.xlane.f32.xlu0 %v774
    %v776 = vpop.xlane.xlu0 %775
    %v777 = vsel %vm198, %v763, 0.0
    %778 = vadd.xlane.f32.xlu0 %v777
    %v779 = vpop.xlane.xlu0 %778
    %v780 = vsel %vm198, %v764, 0.0
    %781 = vadd.xlane.f32.xlu0 %v780
    %v782 = vpop.xlane.xlu0 %781
    %v783 = vsel %vm198, %v765, 0.0
    %784 = vadd.xlane.f32.xlu0 %v783
    %v785 = vpop.xlane.xlu0 %784
    %v786 = vsel %vm198, %v766, 0.0
    %787 = vadd.xlane.f32.xlu0 %v786
    %v788 = vpop.xlane.xlu0 %787
    %v789 = vsel %vm198, %v767, 0.0
    %790 = vadd.xlane.f32.xlu0 %v789
    %v791 = vpop.xlane.xlu0 %790
    %792 = vrot.lane.b32.xlu0 %v758, 56
    %v793 = vpop.permute.xlu0 %792
    %v795 = vmul.f32 %v745, %v793
    %v796 = vmul.f32 %v746, %v793
    %v797 = vmul.f32 %v747, %v793
    %v798 = vmul.f32 %v748, %v793
    %v799 = vmul.f32 %v749, %v793
    %v800 = vmul.f32 %v750, %v793
    %v801 = vmul.f32 %v751, %v793
    %v802 = vmul.f32 %v752, %v793
    %vm803 = vcmask 261120
    %v804 = vsel %vm803, %v795, 0.0
    %805 = vadd.xlane.f32.xlu0 %v804
    %v806 = vpop.xlane.xlu0 %805
    %v807 = vsel %vm803, %v796, 0.0
    %808 = vadd.xlane.f32.xlu0 %v807
    %v809 = vpop.xlane.xlu0 %808
    %v810 = vsel %vm803, %v797, 0.0
    %811 = vadd.xlane.f32.xlu0 %v810
    %v812 = vpop.xlane.xlu0 %811
    %v813 = vsel %vm803, %v798, 0.0
    %814 = vadd.xlane.f32.xlu0 %v813
    %v815 = vpop.xlane.xlu0 %814
    %v816 = vsel %vm803, %v799, 0.0
    %817 = vadd.xlane.f32.xlu0 %v816
    %v818 = vpop.xlane.xlu0 %817
    %v819 = vsel %vm803, %v800, 0.0
    %820 = vadd.xlane.f32.xlu0 %v819
    %v821 = vpop.xlane.xlu0 %820
    %v822 = vsel %vm803, %v801, 0.0
    %823 = vadd.xlane.f32.xlu0 %v822
    %v824 = vpop.xlane.xlu0 %823
    %v825 = vsel %vm803, %v802, 0.0
    %826 = vadd.xlane.f32.xlu0 %v825
    %v827 = vpop.xlane.xlu0 %826
    %v828 = vadd.f32 %v770, %v806
    %v829 = vadd.f32 %v773, %v809
    %v830 = vadd.f32 %v776, %v812
    %v831 = vadd.f32 %v779, %v815
    %v832 = vadd.f32 %v782, %v818
    %v833 = vadd.f32 %v785, %v821
    %v834 = vadd.f32 %v788, %v824
    %v835 = vadd.f32 %v791, %v827
    %v836 = vadd.f32 %v828, %v758
    %v837 = vadd.f32 %v829, %v758
    %v838 = vadd.f32 %v830, %v758
    %v839 = vadd.f32 %v831, %v758
    %v840 = vadd.f32 %v832, %v758
    %v841 = vadd.f32 %v833, %v758
    %v842 = vadd.f32 %v834, %v758
    %v843 = vadd.f32 %v835, %v758
    %v844 = vxor.u32 %v836, 2147483648
    %v845 = vxor.u32 %v837, 2147483648
    %v846 = vxor.u32 %v838, 2147483648
    %v847 = vxor.u32 %v839, 2147483648
    %v848 = vxor.u32 %v840, 2147483648
    %v849 = vxor.u32 %v841, 2147483648
    %v850 = vxor.u32 %v842, 2147483648
    %v851 = vxor.u32 %v843, 2147483648
    %v852 = vmul.f32 %v844, 1.442695
    %v853 = vpow.pop %v852
    %v854 = vmul.f32 %v845, 1.442695
    %v855 = vpow.pop %v854
    %v856 = vmul.f32 %v846, 1.442695
    %v857 = vpow.pop %v856
    %v858 = vmul.f32 %v847, 1.442695
    %v859 = vpow.pop %v858
    %v860 = vmul.f32 %v848, 1.442695
    %v861 = vpow.pop %v860
    %v862 = vmul.f32 %v849, 1.442695
    %v863 = vpow.pop %v862
    %v864 = vmul.f32 %v850, 1.442695
    %v865 = vpow.pop %v864
    %v866 = vmul.f32 %v851, 1.442695
    %v867 = vpow.pop %v866
    %v868 = vadd.f32 %v853, 1.0
    %v869 = vadd.f32 %v855, 1.0
    %v870 = vadd.f32 %v857, 1.0
    %v871 = vadd.f32 %v859, 1.0
    %v872 = vadd.f32 %v861, 1.0
    %v873 = vadd.f32 %v863, 1.0
    %v874 = vadd.f32 %v865, 1.0
    %v875 = vadd.f32 %v867, 1.0
    %v876 = vrcp.pop %v868
    %v877 = vmul.f32 1.0, %v876
    %v878 = vrcp.pop %v869
    %v879 = vmul.f32 1.0, %v878
    %v880 = vrcp.pop %v870
    %v881 = vmul.f32 1.0, %v880
    %v882 = vrcp.pop %v871
    %v883 = vmul.f32 1.0, %v882
    %v884 = vrcp.pop %v872
    %v885 = vmul.f32 1.0, %v884
    %v886 = vrcp.pop %v873
    %v887 = vmul.f32 1.0, %v886
    %v888 = vrcp.pop %v874
    %v889 = vmul.f32 1.0, %v888
    %v890 = vrcp.pop %v875
    %v891 = vmul.f32 1.0, %v890
    %v892 = vadd.f32 %v877, 1.0
    %v893 = vadd.f32 %v879, 1.0
    %v894 = vadd.f32 %v881, 1.0
    %v895 = vadd.f32 %v883, 1.0
    %v896 = vadd.f32 %v885, 1.0
    %v897 = vadd.f32 %v887, 1.0
    %v898 = vadd.f32 %v889, 1.0
    %v899 = vadd.f32 %v891, 1.0
    %v900 = vmul.f32 %v892, 0.5
    %v901 = vmul.f32 %v893, 0.5
    %v902 = vmul.f32 %v894, 0.5
    %v903 = vmul.f32 %v895, 0.5
    %v904 = vmul.f32 %v896, 0.5
    %v905 = vmul.f32 %v897, 0.5
    %v906 = vmul.f32 %v898, 0.5
    %v907 = vmul.f32 %v899, 0.5
    %v908 = vmax.f32 %v900, 0.0
    %v909 = vmax.f32 %v901, 0.0
    %v910 = vmax.f32 %v902, 0.0
    %v911 = vmax.f32 %v903, 0.0
    %v912 = vmax.f32 %v904, 0.0
    %v913 = vmax.f32 %v905, 0.0
    %v914 = vmax.f32 %v906, 0.0
    %v915 = vmax.f32 %v907, 0.0
    %v916 = vmin.f32 %v908, 1.0
    %v917 = vmin.f32 %v909, 1.0
    %v918 = vmin.f32 %v910, 1.0
    %v919 = vmin.f32 %v911, 1.0
    %v920 = vmin.f32 %v912, 1.0
    %v921 = vmin.f32 %v913, 1.0
    %v922 = vmin.f32 %v914, 1.0
    %v923 = vmin.f32 %v915, 1.0
    %vm924 = vcmp.gt.f32.partialorder %v916, 0.5
    %vm925 = vcmp.gt.f32.partialorder %v917, 0.5
    %vm926 = vcmp.gt.f32.partialorder %v918, 0.5
    %vm927 = vcmp.gt.f32.partialorder %v919, 0.5
    %vm928 = vcmp.gt.f32.partialorder %v920, 0.5
    %vm929 = vcmp.gt.f32.partialorder %v921, 0.5
    %vm930 = vcmp.gt.f32.partialorder %v922, 0.5
    %vm931 = vcmp.gt.f32.partialorder %v923, 0.5
    %v932 = vsel %vm924, 1, 0
    %v933 = vsel %vm925, 1, 0
    %v934 = vsel %vm926, 1, 0
    %v935 = vsel %vm927, 1, 0
    %v936 = vsel %vm928, 1, 0
    %v937 = vsel %vm929, 1, 0
    %v938 = vsel %vm930, 1, 0
    %v939 = vsel %vm931, 1, 0
    %v940 = vcvt.s32.f32 %v932
    %v941 = vcvt.s32.f32 %v933
    %v942 = vcvt.s32.f32 %v934
    %v943 = vcvt.s32.f32 %v935
    %v944 = vcvt.s32.f32 %v936
    %v945 = vcvt.s32.f32 %v937
    %v946 = vcvt.s32.f32 %v938
    %v947 = vcvt.s32.f32 %v939
    %948 = vst.msk [vmem:[#allocation8] sm:$0xff] %vm803, %v745
    %949 = vst.msk [vmem:[#allocation8 + $0x8] sm:$0xff] %vm803, %v746
    %950 = vst.msk [vmem:[#allocation8 + $0x10] sm:$0xff] %vm803, %v747
    %951 = vst.msk [vmem:[#allocation8 + $0x18] sm:$0xff] %vm803, %v748
    %952 = vst.msk [vmem:[#allocation8 + $0x20] sm:$0xff] %vm803, %v749
    %953 = vst.msk [vmem:[#allocation8 + $0x28] sm:$0xff] %vm803, %v750
    %954 = vst.msk [vmem:[#allocation8 + $0x30] sm:$0xff] %vm803, %v751
    %955 = vst.msk [vmem:[#allocation8 + $0x38] sm:$0xff] %vm803, %v752
    %964 = vrot.lane.b32.xlu0 %v673, 32
    %v965 = vpop.permute.xlu0 %964
    %966 = vrot.lane.b32.xlu0 %v674, 32
    %v967 = vpop.permute.xlu0 %966
    %968 = vrot.lane.b32.xlu0 %v675, 32
    %v969 = vpop.permute.xlu0 %968
    %970 = vrot.lane.b32.xlu0 %v676, 32
    %v971 = vpop.permute.xlu0 %970
    %972 = vrot.lane.b32.xlu0 %v677, 32
    %v973 = vpop.permute.xlu0 %972
    %974 = vrot.lane.b32.xlu0 %v678, 32
    %v975 = vpop.permute.xlu0 %974
    %976 = vrot.lane.b32.xlu0 %v679, 32
    %v977 = vpop.permute.xlu0 %976
    %978 = vrot.lane.b32.xlu0 %v680, 32
    %v979 = vpop.permute.xlu0 %978
    %vm988 = vcmask 523520
    %989 = vst.msk [vmem:[#allocation8] sm:$0xff] %vm988, %v965
    %990 = vst.msk [vmem:[#allocation8 + $0x8] sm:$0xff] %vm988, %v967
    %991 = vst.msk [vmem:[#allocation8 + $0x10] sm:$0xff] %vm988, %v969
    %992 = vst.msk [vmem:[#allocation8 + $0x18] sm:$0xff] %vm988, %v971
    %993 = vst.msk [vmem:[#allocation8 + $0x20] sm:$0xff] %vm988, %v973
    %994 = vst.msk [vmem:[#allocation8 + $0x28] sm:$0xff] %vm988, %v975
    %995 = vst.msk [vmem:[#allocation8 + $0x30] sm:$0xff] %vm988, %v977
    %996 = vst.msk [vmem:[#allocation8 + $0x38] sm:$0xff] %vm988, %v979
    %1005 = vrot.lane.b32.xlu0 %v940, 88
    %v1006 = vpop.permute.xlu0 %1005
    %1007 = vrot.lane.b32.xlu0 %v941, 88
    %v1008 = vpop.permute.xlu0 %1007
    %1009 = vrot.lane.b32.xlu0 %v942, 88
    %v1010 = vpop.permute.xlu0 %1009
    %1011 = vrot.lane.b32.xlu0 %v943, 88
    %v1012 = vpop.permute.xlu0 %1011
    %1013 = vrot.lane.b32.xlu0 %v944, 88
    %v1014 = vpop.permute.xlu0 %1013
    %1015 = vrot.lane.b32.xlu0 %v945, 88
    %v1016 = vpop.permute.xlu0 %1015
    %1017 = vrot.lane.b32.xlu0 %v946, 88
    %v1018 = vpop.permute.xlu0 %1017
    %1019 = vrot.lane.b32.xlu0 %v947, 88
    %v1020 = vpop.permute.xlu0 %1019
    %vm1029 = vcmask 531968
    %1030 = vst.msk [vmem:[#allocation8] sm:$0xff] %vm1029, %v1006
    %1031 = vst.msk [vmem:[#allocation8 + $0x8] sm:$0xff] %vm1029, %v1008
    %1032 = vst.msk [vmem:[#allocation8 + $0x10] sm:$0xff] %vm1029, %v1010
    %1033 = vst.msk [vmem:[#allocation8 + $0x18] sm:$0xff] %vm1029, %v1012
    %1034 = vst.msk [vmem:[#allocation8 + $0x20] sm:$0xff] %vm1029, %v1014
    %1035 = vst.msk [vmem:[#allocation8 + $0x28] sm:$0xff] %vm1029, %v1016
    %1036 = vst.msk [vmem:[#allocation8 + $0x30] sm:$0xff] %vm1029, %v1018
    %1037 = vst.msk [vmem:[#allocation8 + $0x38] sm:$0xff] %vm1029, %v1020
    // Predicated region
    $region34: #{tpu_custom_call.1} parent=1 // pred_check
      _
    $region35: #{tpu_custom_call.1} parent=1 // pred_check_branch
      %1039 = sbr.rel (0) target = $region37
    $region36: #{tpu_custom_call.1} parent=1 // pred_region
      %s1041 = ssub.s32 1024, 1024
      %1042 = vsyncadd [#allocation4], %s1041
      %s1043 = sshll.u32 [#allocation8], 4
      %s1044 = int_to_ptr.vmem [resolvable:$true] %s1043
      %1049 = dma.vmem_to_hbm [thread:$0]  %s1044, 1024, %s5, [#allocation4], 128, 128, 8
    $region37: #{tpu_custom_call.1} parent=1 // pred_fallthru
      _
    // Predicated region
    $region38: #{tpu_custom_call.1} parent=1 // pred_check
      _
    $region39: #{tpu_custom_call.1} parent=1 // pred_check_branch
      %1051 = sbr.rel (0) target = $region41
    $region40: #{tpu_custom_call.1} parent=1 // pred_region
      %1052 = dma.done [#allocation4], 1024
    $region41: #{tpu_custom_call.1} parent=1 // pred_fallthru
      _
    %1053 = vsyncpa [#allocation3], 1
    %1054 = vsyncpa [#allocation6], 1
    %1055 = vsyncpa [#allocation4], 1

</llo_original>
